<compile_context>
chip_gen: v7x
topology: tpu7x:2x2x1
jax: 0.10.0
libtpu: 0.0.40
codegen_flags: <defaults>
</compile_context>

<pallas_src>
import functools

import jax
import jax.numpy as jnp
from jax.experimental import pallas as pl
from jax.experimental.pallas import tpu as pltpu

_EPS = 1e-5


@functools.lru_cache(maxsize=None)
def _vmem_budget():
    """Per-generation scoped-VMEM budget: ~3/4 of physical per-core VMEM, capped
    at 96 MiB (v5e/v6e: 128 MiB physical -> 96 MiB; v7x: 64 MiB -> 48 MiB)."""
    try:
        cap = pltpu.get_tpu_info().vmem_capacity_bytes
        return int(min(96 * 1024 * 1024, (cap * 3) // 4))
    except Exception:  # conservative fallback if the query is unavailable
        return 64 * 1024 * 1024


def _round_up(x, m):
    return ((x + m - 1) // m) * m


# ----------------------- fused 1x1-conv (matmul) kernel -----------------------

def _matmul_bias_kernel(*refs, apply_relu, has_residual):
    """out = relu?( x @ w_scaled + bias (+ residual) ); bf16 MXU, f32 epilogue."""
    if has_residual:
        x_ref, w_ref, bias_ref, res_ref, o_ref = refs
    else:
        x_ref, w_ref, bias_ref, o_ref = refs
    # On-tile cast (no-op when the activation is already bf16); folded BN scale
    # already lives in the weight columns.
    acc = jnp.dot(x_ref[...].astype(jnp.bfloat16), w_ref[...],
                  preferred_element_type=jnp.float32)
    out = acc + bias_ref[...]
    if has_residual:
        out = out + res_ref[...].astype(jnp.float32)
    if apply_relu:
        out = jnp.maximum(out, 0.0)
    o_ref[...] = out.astype(o_ref.dtype)


def fused_matmul_bn(x, w_scaled, bias2, residual=None, apply_relu=True,
                    out_dtype=jnp.bfloat16, tm=512):
    """relu?((x @ w_scaled) + bias2 (+ residual)).

    x: (M, K) any float dtype (cast to bf16 on-tile),
    w_scaled: (K, N) bf16 with BN scale folded in, bias2: (1, N) f32,
    residual: (M, N) or None (added in f32).
    Ragged M is handled with a cdiv grid; the partial last block is masked on
    store, so no HBM zero-pad pass is needed.  tm=512 keeps the HBM-bound 1x1
    stages near roofline on v5e while still fitting v6e/v7x VMEM easily.
    """
    M, K = x.shape
    K2, Nc = w_scaled.shape
    assert K == K2
    tm = min(tm, _round_up(M, 8))

    in_specs = [
        pl.BlockSpec((tm, K), lambda i: (i, 0)),     # activation row tile
        pl.BlockSpec((K, Nc), lambda i: (0, 0)),     # resident scaled weight (bf16)
        pl.BlockSpec((1, Nc), lambda i: (0, 0)),     # folded BN bias (f32)
    ]
    args = [x, w_scaled, bias2]
    if residual is not None:
        in_specs.append(pl.BlockSpec((tm, Nc), lambda i: (i, 0)))
        args.append(residual)

    kernel = functools.partial(_matmul_bias_kernel,
                               apply_relu=apply_relu,
                               has_residual=residual is not None)
    return pl.pallas_call(
        kernel,
        out_shape=jax.ShapeDtypeStruct((M, Nc), out_dtype),
        grid=(pl.cdiv(M, tm),),
        in_specs=in_specs,
        out_specs=pl.BlockSpec((tm, Nc), lambda i: (i, 0)),
        compiler_params=pltpu.CompilerParams(
            dimension_semantics=("parallel",),
            vmem_limit_bytes=_vmem_budget()),
    )(*args)


# ------------------ fused 3x3-conv (row-tiled, tap-concat) kernel ------------------

def _conv3x3_bn_relu_kernel(x_hbm, w_ref, b_ref, o_ref, xbuf, sem, *, stride, dilation):
    """relu(conv3x3(x) * bn_scale + bn_bias) for one (image, row-tile) grid step.

    x_hbm: (N, Hp, Wp, Cin) bf16 spatially pre-padded image, left in HBM (ANY);
           the halo'd row window is DMA'd manually (double-buffered) because the
           windows of adjacent tiles overlap by 2*dilation rows.
    w_ref: (3, 3*Cin, Cout) bf16 -- per kernel-row weight slab with the three
           column taps concatenated along K (BN scale folded in).
    b_ref: (1, Cout) f32 folded BN bias.
    o_ref: (th, Wo, Cout) output row tile (batch dim squeezed).
    """
    n = pl.program_id(0)
    j = pl.program_id(1)
    jt = pl.num_programs(1)
    th, Wo, cout = o_ref.shape
    _, rows_in, _, cin = xbuf.shape
    row_step = th * stride

    def start_fetch(jj, slot):
        pltpu.make_async_copy(x_hbm.at[n, pl.ds(jj * row_step, rows_in)],
                              xbuf.at[slot], sem.at[slot]).start()

    @pl.when(j == 0)                                  # prime the pipe once per image
    def _():
        start_fetch(0, 0)

    slot = j & 1
    pltpu.make_async_copy(x_hbm.at[n, pl.ds(0, rows_in)],   # dummy src, shape only
                          xbuf.at[slot], sem.at[slot]).wait()

    @pl.when(j + 1 < jt)                              # prefetch next row tile
    def _():
        start_fetch(j + 1, 1 - slot)

    x = xbuf[slot]                                    # (rows_in, Wp, Cin) bf16 -- no f32 copy
    acc = jnp.zeros((th * Wo, cout), jnp.float32)
    for ki in range(3):                               # 3 MXU calls, K = 3*Cin each
        taps = []
        for kj in range(3):
            h0, w0 = ki * dilation, kj * dilation
            limit = (h0 + (th - 1) * stride + 1, w0 + (Wo - 1) * stride + 1, cin)
            if stride == 1:
                taps.append(jax.lax.slice(x, (h0, w0, 0), limit))
            else:
                # stride>1 path: strided VMEM slice (not exercised by the test below).
                taps.append(jax.lax.slice(x, (h0, w0, 0), limit, (stride, stride, 1)))
        win = jnp.concatenate(taps, axis=-1).reshape(th * Wo, 3 * cin)
        acc = acc + jnp.dot(win, w_ref[ki], preferred_element_type=jnp.float32)
    out = jnp.maximum(acc + b_ref[...], 0.0)
    o_ref[...] = out.reshape(th, Wo, cout).astype(o_ref.dtype)


def fused_conv3x3_bn_relu(x_nhwc, w_rows, bias2, stride=1, dilation=1,
                          th=64, out_dtype=jnp.bfloat16):
    """x: (N,H,W,Cin); w_rows: (3, 3*Cin, Cout) (kj-major, channel-minor, BN folded);
    bias2: (1, Cout) f32.  Row-tiled over output rows with a halo'd manual DMA."""
    N, H, W, Cin = x_nhwc.shape
    Cout = w_rows.shape[-1]
    pad = dilation
    Ho = (H - 1) // stride + 1
    Wo = (W - 1) // stride + 1
    th = max(1, min(th, Ho))
    jt = pl.cdiv(Ho, th)
    rows_in = (th - 1) * stride + 2 * dilation + 1
    Wp = W + 2 * pad
    # Bottom pad is extended so the last (possibly ragged) row tile's DMA window
    # stays in bounds; its extra output rows are masked on store by Pallas.
    pad_bot = max(pad, (jt - 1) * th * stride + rows_in - H - pad)
    # TODO(synk): fold this halo pad into the producing kernel's out_spec (or mask
    #             edge taps in-kernel) to avoid one extra HBM pass over the activation.
    xp = jnp.pad(x_nhwc.astype(jnp.bfloat16),
                 ((0, 0), (pad, pad_bot), (pad, pad), (0, 0)))

    kernel = functools.partial(_conv3x3_bn_relu_kernel, stride=stride, dilation=dilation)
    return pl.pallas_call(
        kernel,
        out_shape=jax.ShapeDtypeStruct((N, Ho, Wo, Cout), out_dtype),
        grid=(N, jt),
        in_specs=[
            pl.BlockSpec(memory_space=pl.ANY),                       # padded image (HBM)
            pl.BlockSpec((3, 3 * Cin, Cout), lambda n, j: (0, 0, 0)),  # resident weights
            pl.BlockSpec((1, Cout), lambda n, j: (0, 0)),              # folded BN bias
        ],
        out_specs=pl.BlockSpec((None, th, Wo, Cout), lambda n, j: (n, j, 0, 0)),
        scratch_shapes=[
            pltpu.VMEM((2, rows_in, Wp, Cin), jnp.bfloat16),           # double buffer
            pltpu.SemaphoreType.DMA((2,)),
        ],
        compiler_params=pltpu.CompilerParams(
            dimension_semantics=("parallel", "arbitrary"),
            vmem_limit_bytes=_vmem_budget()),
    )(xp, w_rows, bias2)


# ------------------------------ parameter prep --------------------------------

def _fold_bn(p, prefix):
    g, b, m, v = p[prefix + "_g"], p[prefix + "_b"], p[prefix + "_m"], p[prefix + "_v"]
    s = g / jnp.sqrt(v + _EPS)
    return s.astype(jnp.float32), (b - m * s).astype(jnp.float32)


def prepare_bottleneck_params(p):
    """One-time prep (hoist out of forward): fold BN scale into bf16 conv weights,
    keep f32 biases, and pre-layout everything for the kernels."""
    width = p["w1"].shape[0]
    planes = p["w3"].shape[0]
    # TODO(synk): grouped 3x3 conv (groups > 1) not implemented; groups=1 only.
    assert p["w2"].shape[1] == width, "groups > 1 unsupported"

    s1, b1 = _fold_bn(p, "bn1")
    s2, b2 = _fold_bn(p, "bn2")
    s3, b3 = _fold_bn(p, "bn3")

    pp = {
        "width": width,
        "planes": planes,
        "w1": (p["w1"][:, :, 0, 0].T.astype(jnp.float32) * s1[None, :]).astype(jnp.bfloat16),
        "b1": b1.reshape(1, width),
        # (kh, kw, in, out) -> (3, 3*Cin, Cout): kj-major, channel-minor along K.
        "w2": (jnp.transpose(p["w2"], (2, 3, 1, 0)).astype(jnp.float32)
               * s2[None, None, None, :]).reshape(3, 3 * width, width).astype(jnp.bfloat16),
        "b2": b2.reshape(1, width),
        "w3": (p["w3"][:, :, 0, 0].T.astype(jnp.float32) * s3[None, :]).astype(jnp.bfloat16),
        "b3": b3.reshape(1, planes),
    }
    if "wd" in p:
        sd, bd = _fold_bn(p, "bnd")
        pp["wd"] = (p["wd"][:, :, 0, 0].T.astype(jnp.float32) * sd[None, :]).astype(jnp.bfloat16)
        pp["bd"] = bd.reshape(1, planes)
    return pp


# ------------------------------ forward (NHWC) ---------------------------------

def bottleneck_forward_nhwc(x_nhwc, pp, stride=1, dilation=1):
    """Bottleneck forward on NHWC activations with pre-folded params."""
    N, H, W, Cin = x_nhwc.shape
    width, planes = pp["width"], pp["planes"]

    # conv1 (1x1) + bn1 + relu  -> bf16 activations
    out = fused_matmul_bn(x_nhwc.reshape(-1, Cin), pp["w1"], pp["b1"],
                          apply_relu=True, out_dtype=jnp.bfloat16)
    out = out.reshape(N, H, W, width)

    # conv2 (3x3, stride, dilation) + bn2 + relu  -- row-tiled, in-VMEM tap concat
    out = fused_conv3x3_bn_relu(out, pp["w2"], pp["b2"], stride=stride,
                                dilation=dilation, out_dtype=jnp.bfloat16)
    _, Ho, Wo, _ = out.shape

    # downsample / identity path
    if stride == 1:
        xds = x_nhwc
    else:
        # TODO(synk): fold the stride-s decimation into the downsample kernel's
        #             index_map instead of a wrapper-side strided slice.
        xds = x_nhwc[:, ::stride, ::stride, :]
    if "wd" in pp:
        identity = fused_matmul_bn(xds.reshape(-1, Cin), pp["wd"], pp["bd"],
                                   apply_relu=False, out_dtype=jnp.bfloat16)
    else:
        assert Cin == planes, "identity path requires inplanes == planes (expansion=1)"
        # Passed in its native dtype; the final kernel adds it in f32 (avoids a
        # separate wrapper-side cast pass over HBM).
        identity = xds.reshape(-1, Cin)

    # conv3 (1x1) + bn3 + residual add + relu (one fused kernel), final f32 output
    out = fused_matmul_bn(out.reshape(-1, width), pp["w3"], pp["b3"],
                          residual=identity, apply_relu=True, out_dtype=jnp.float32)
    return out.reshape(N, Ho, Wo, planes)


def bottleneck_forward(x_nchw, p, stride=1, dilation=1):
    """NCHW adapter (PyTorch-compatible I/O).  Chained blocks should stay NHWC and
    call bottleneck_forward_nhwc with pre-prepared params to avoid relayouts."""
    pp = prepare_bottleneck_params(p)
    x = jnp.transpose(x_nchw, (0, 2, 3, 1))
    y = bottleneck_forward_nhwc(x, pp, stride=stride, dilation=dilation)
    return jnp.transpose(y, (0, 3, 1, 2))


# --------------------------- pure-JAX reference -------------------------------

def ref_bottleneck(x, p, stride=1, dilation=1):
    def conv(x, w, s, d=1, pad=0):
        return jax.lax.conv_general_dilated(
            x, w, (s, s), [(pad, pad), (pad, pad)], rhs_dilation=(d, d),
            dimension_numbers=("NCHW", "OIHW", "NCHW"))

    def bn(x, prefix):
        g, b, m, v = (p[prefix + k] for k in ("_g", "_b", "_m", "_v"))
        return ((x - m[None, :, None, None]) / jnp.sqrt(v[None, :, None, None] + _EPS)
                * g[None, :, None, None] + b[None, :, None, None])

    out = jnp.maximum(bn(conv(x, p["w1"], 1), "bn1"), 0)
    out = jnp.maximum(bn(conv(out, p["w2"], stride, dilation, dilation), "bn2"), 0)
    out = bn(conv(out, p["w3"], 1), "bn3")
    identity = bn(conv(x, p["wd"], stride), "bnd") if "wd" in p else x
    return jnp.maximum(out + identity, 0)


# --------------------------------- main ---------------------------------------

def make_params(inplanes, planes, groups=1, base_width=64, need_downsample=True):
    width = int(planes * (base_width / 64.0)) * groups
    keys = jax.random.split(jax.random.PRNGKey(0), 4)
    p = {
        "w1": 0.2 * jax.random.normal(keys[0], (width, inplanes, 1, 1), jnp.float32),
        "w2": 0.2 * jax.random.normal(keys[1], (width, width // groups, 3, 3), jnp.float32),
        "w3": 0.2 * jax.random.normal(keys[2], (planes, width, 1, 1), jnp.float32),
    }

    def bn_init(prefix, c):
        a = jnp.arange(c, dtype=jnp.float32)
        p[prefix + "_g"] = 1.0 + 0.10 * a
        p[prefix + "_b"] = 0.05 * a
        p[prefix + "_m"] = 0.02 * a - 0.10
        p[prefix + "_v"] = 1.0 + 0.03 * a

    bn_init("bn1", width)
    bn_init("bn2", width)
    bn_init("bn3", planes)
    if need_downsample:
        p["wd"] = 0.2 * jax.random.normal(keys[3], (planes, inplanes, 1, 1), jnp.float32)
        bn_init("bnd", planes)
    return p


if __name__ == "__main__":
    N, inplanes, H, W = 2, 4, 16, 16
    planes, stride, dilation = 8, 1, 1  # inplanes != planes -> downsample branch active

    p = make_params(inplanes, planes, need_downsample=(stride != 1 or inplanes != planes))
    x = jax.random.normal(jax.random.PRNGKey(0), (N, inplanes, H, W), jnp.float32)

    out = jax.block_until_ready(bottleneck_forward(x, p, stride=stride, dilation=dilation))
    ref = jax.block_until_ready(ref_bottleneck(x, p, stride=stride, dilation=dilation))

    assert out.shape == ref.shape, (out.shape, ref.shape)
    # bf16 MXU operands + bf16 intermediate activations -> ~1e-2 relative error
    # through three matmul stages vs. the pure-f32 reference.
    assert jnp.allclose(out, ref, atol=1e-1, rtol=1e-1), float(jnp.max(jnp.abs(out - ref)))

    print("KERNEL_OK")
</pallas_src>

<mosaic_0001>
module attributes {stable_mosaic.version = 11 : i64} {
  func.func @_matmul_bias_kernel(%arg0: i32, %arg1: memref<512x4xf32, #tpu.memory_space<vmem>>, %arg2: memref<4x8xbf16, #tpu.memory_space<vmem>>, %arg3: memref<1x8xf32, #tpu.memory_space<vmem>>, %arg4: memref<512x8xbf16, #tpu.memory_space<vmem>>) attributes {dimension_semantics = [#tpu.dimension_semantics<parallel>], iteration_bounds = array<i64: 1>, scalar_prefetch = 0 : i64, scratch_operands = 0 : i64, tpu.core_type = #tpu.core_type<tc>, window_params = [{transform_indices = @transform_0, window_bounds = array<i64: 512, 4>}, {pipeline_mode = #tpu.pipeline_mode<synchronous>, transform_indices = @transform_1, window_bounds = array<i64: 4, 8>}, {pipeline_mode = #tpu.pipeline_mode<synchronous>, transform_indices = @transform_2, window_bounds = array<i64: 1, 8>}, {transform_indices = @transform_3, window_bounds = array<i64: 512, 8>}]} {
    %c0 = arith.constant 0 : index
    %c0_0 = arith.constant 0 : index
    %0 = vector.load %arg1[%c0, %c0_0] : memref<512x4xf32, #tpu.memory_space<vmem>>, vector<512x4xf32>
    %1 = arith.truncf %0 : vector<512x4xf32> to vector<512x4xbf16>
    %c0_1 = arith.constant 0 : index
    %c0_2 = arith.constant 0 : index
    %2 = vector.load %arg2[%c0_1, %c0_2] : memref<4x8xbf16, #tpu.memory_space<vmem>>, vector<4x8xbf16>
    %cst = arith.constant dense<0.000000e+00> : vector<512x8xf32>
    %3 = tpu.matmul %1, %2, %cst {dimension_numbers = #tpu.dot_dimension_numbers<[1], [0], [0], [1], [0, 0, 1, 1], [], []>} : vector<512x4xbf16>, vector<4x8xbf16>, vector<512x8xf32> -> vector<512x8xf32>
    %c0_3 = arith.constant 0 : index
    %c0_4 = arith.constant 0 : index
    %4 = vector.load %arg3[%c0_3, %c0_4] : memref<1x8xf32, #tpu.memory_space<vmem>>, vector<1x8xf32>
    %5 = vector.broadcast %4 : vector<1x8xf32> to vector<512x8xf32>
    %6 = arith.addf %3, %5 : vector<512x8xf32>
    %cst_5 = arith.constant 0.000000e+00 : f32
    %7 = vector.broadcast %cst_5 : f32 to vector<512x8xf32>
    %8 = arith.maximumf %6, %7 : vector<512x8xf32>
    %9 = arith.truncf %8 : vector<512x8xf32> to vector<512x8xbf16>
    %c0_6 = arith.constant 0 : index
    %c0_7 = arith.constant 0 : index
    %10 = vector.load %arg4[%c0_6, %c0_7] : memref<512x8xbf16, #tpu.memory_space<vmem>>, vector<512x8xbf16>
    tpu.vector_store %arg4[%c0_6, %c0_7], %9 {strides = array<i32>} : memref<512x8xbf16, #tpu.memory_space<vmem>>, vector<512x8xbf16>,
    return
  }
  func.func @transform_0(%arg0: i32) -> (i32, i32) {
    %c0_i32 = arith.constant 0 : i32
    %c0_i32_0 = arith.constant 0 : i32
    return %arg0, %c0_i32 : i32, i32
  }
  func.func @transform_1(%arg0: i32) -> (i32, i32) {
    %c0_i32 = arith.constant 0 : i32
    %c0_i32_0 = arith.constant 0 : i32
    %c0_i32_1 = arith.constant 0 : i32
    return %c0_i32, %c0_i32_0 : i32, i32
  }
  func.func @transform_2(%arg0: i32) -> (i32, i32) {
    %c0_i32 = arith.constant 0 : i32
    %c0_i32_0 = arith.constant 0 : i32
    %c0_i32_1 = arith.constant 0 : i32
    return %c0_i32, %c0_i32_0 : i32, i32
  }
  func.func @transform_3(%arg0: i32) -> (i32, i32) {
    %c0_i32 = arith.constant 0 : i32
    %c0_i32_0 = arith.constant 0 : i32
    return %arg0, %c0_i32 : i32, i32
  }
}

</mosaic_0001>

<llo_original>
// kernel: tpu_custom_call.1
$region0: #{tpu_custom_call.1}
  #allocation0 [shape = 'u32[]', space=smem, size = 0x4, offset = 0x4, fixed_abs, tag = 'smem constant byte address 0x4 - core index']
  #allocation1 [shape = 'u32[144,128]{1,0:T(1,128)}', space=vmem, size = 0x12000, scoped, tag = 'internal scratch']
  %s0 = inlined_call_operand.hbm [shape: f32[512,4], index: 0, kind: input, shape index: {}]
  %s1 = inlined_call_operand.hbm [shape: bf16[4,8], index: 1, kind: input, shape index: {}]
  %s2 = inlined_call_operand.hbm [shape: f32[1,8], index: 2, kind: input, shape index: {}]
  %s3 = inlined_call_operand.hbm [shape: bf16[512,8], index: 3, kind: output, shape index: {}]
  %s4 = sld [smem:[#allocation0]]
  $region34: #{tpu_custom_call.1} parent=0
    _
  %s6 = ssub.s32 1, %s4
  %s7 = scalar_select 0, %s6, %s4
  $region1: #{tpu_custom_call.1} parent=0
    #allocation2 [shape = 'u8[262144]{0}', space=vmem, size = 0x40000, scoped, tag = 'input window, operand 0, single buffered']
    #allocation3 [shape = 's32[1]{0}', space=sflag, size = 0x4, scoped, tag = 'scoped memory for tpu_custom_call.1']
    #allocation4 [shape = 's32[1]{0}', space=sflag, size = 0x4, scoped, tag = 'scoped memory for tpu_custom_call.1']
    #allocation5 [shape = 'u8[1024]{0}', space=vmem, size = 0x400, scoped, tag = 'input window, operand 1, single buffered']
    #allocation6 [shape = 's32[1]{0}', space=sflag, size = 0x4, scoped, tag = 'scoped memory for tpu_custom_call.1']
    #allocation7 [shape = 'u8[512]{0}', space=vmem, size = 0x400, scoped, tag = 'input window, operand 2, single buffered']
    #allocation8 [shape = 'u8[131072]{0}', space=vmem, size = 0x20000, scoped, tag = 'output window, operand 0, single buffered']
    %8 = vsyncpa [#allocation3], 0
    %9 = vsyncpa [#allocation6], 0
    %10 = vsyncpa [#allocation4], 0
    // Predicated region
    $region2: #{tpu_custom_call.1} parent=1 // pred_check
      _
    $region3: #{tpu_custom_call.1} parent=1 // pred_check_branch
      %12 = sbr.rel (0) target = $region5
    $region4: #{tpu_custom_call.1} parent=1 // pred_region
      %s14 = ssub.s32 8192, 8192
      %15 = vsyncadd [#allocation3], %s14
      %s16 = sshll.u32 [#allocation2], 4
      %s17 = int_to_ptr.vmem [resolvable:$true] %s16
      %22 = dma.hbm_to_vmem [thread:$0]  %s0, 8192, %s17, [#allocation3], 128, 128, 8
    $region5: #{tpu_custom_call.1} parent=1 // pred_fallthru
      _
    // Predicated region
    $region6: #{tpu_custom_call.1} parent=1 // pred_check
      _
    $region7: #{tpu_custom_call.1} parent=1 // pred_check_branch
      %24 = sbr.rel (0) target = $region9
    $region8: #{tpu_custom_call.1} parent=1 // pred_region
      %s26 = ssub.s32 32, 32
      %27 = vsyncadd [#allocation6], %s26
      %s29 = sshll.u32 [#allocation5], 4
      %s30 = int_to_ptr.vmem [resolvable:$true] %s29
      %32 = dma.hbm_to_vmem [thread:$0]  %s1, 32, %s30, [#allocation6]
    $region9: #{tpu_custom_call.1} parent=1 // pred_fallthru
      _
    // Predicated region
    $region10: #{tpu_custom_call.1} parent=1 // pred_check
      _
    $region11: #{tpu_custom_call.1} parent=1 // pred_check_branch
      %34 = sbr.rel (0) target = $region13
    $region12: #{tpu_custom_call.1} parent=1 // pred_region
      %s36 = ssub.s32 16, 16
      %37 = vsyncadd [#allocation6], %s36
      %s39 = sshll.u32 [#allocation7], 4
      %s40 = int_to_ptr.vmem [resolvable:$true] %s39
      %42 = dma.hbm_to_vmem [thread:$0]  %s2, 16, %s40, [#allocation6]
    $region13: #{tpu_custom_call.1} parent=1 // pred_fallthru
      _
    // Predicated region
    $region14: #{tpu_custom_call.1} parent=1 // pred_check
      _
    $region15: #{tpu_custom_call.1} parent=1 // pred_check_branch
      %44 = sbr.rel (0) target = $region17
    $region16: #{tpu_custom_call.1} parent=1 // pred_region
      %45 = dma.done [#allocation3], 8192
    $region17: #{tpu_custom_call.1} parent=1 // pred_fallthru
      _
    // Predicated region
    $region18: #{tpu_custom_call.1} parent=1 // pred_check
      _
    $region19: #{tpu_custom_call.1} parent=1 // pred_check_branch
      %47 = sbr.rel (0) target = $region21
    $region20: #{tpu_custom_call.1} parent=1 // pred_region
      %48 = dma.done [#allocation6], 32
    $region21: #{tpu_custom_call.1} parent=1 // pred_fallthru
      _
    // Predicated region
    $region22: #{tpu_custom_call.1} parent=1 // pred_check
      _
    $region23: #{tpu_custom_call.1} parent=1 // pred_check_branch
      %50 = sbr.rel (0) target = $region25
    $region24: #{tpu_custom_call.1} parent=1 // pred_region
      %51 = dma.done [#allocation6], 16
    $region25: #{tpu_custom_call.1} parent=1 // pred_fallthru
      _
    %v53 = vld [vmem:[#allocation2] sm:$0xff]
    %v54 = vld [vmem:[#allocation2 + $0x8] sm:$0xff]
    %v55 = vld [vmem:[#allocation2 + $0x10] sm:$0xff]
    %v56 = vld [vmem:[#allocation2 + $0x18] sm:$0xff]
    %v57 = vld [vmem:[#allocation2 + $0x20] sm:$0xff]
    %v58 = vld [vmem:[#allocation2 + $0x28] sm:$0xff]
    %v59 = vld [vmem:[#allocation2 + $0x30] sm:$0xff]
    %v60 = vld [vmem:[#allocation2 + $0x38] sm:$0xff]
    %v61 = vld [vmem:[#allocation2 + $0x40] sm:$0xff]
    %v62 = vld [vmem:[#allocation2 + $0x48] sm:$0xff]
    %v63 = vld [vmem:[#allocation2 + $0x50] sm:$0xff]
    %v64 = vld [vmem:[#allocation2 + $0x58] sm:$0xff]
    %v65 = vld [vmem:[#allocation2 + $0x60] sm:$0xff]
    %v66 = vld [vmem:[#allocation2 + $0x68] sm:$0xff]
    %v67 = vld [vmem:[#allocation2 + $0x70] sm:$0xff]
    %v68 = vld [vmem:[#allocation2 + $0x78] sm:$0xff]
    %v69 = vld [vmem:[#allocation2 + $0x80] sm:$0xff]
    %v70 = vld [vmem:[#allocation2 + $0x88] sm:$0xff]
    %v71 = vld [vmem:[#allocation2 + $0x90] sm:$0xff]
    %v72 = vld [vmem:[#allocation2 + $0x98] sm:$0xff]
    %v73 = vld [vmem:[#allocation2 + $0xa0] sm:$0xff]
    %v74 = vld [vmem:[#allocation2 + $0xa8] sm:$0xff]
    %v75 = vld [vmem:[#allocation2 + $0xb0] sm:$0xff]
    %v76 = vld [vmem:[#allocation2 + $0xb8] sm:$0xff]
    %v77 = vld [vmem:[#allocation2 + $0xc0] sm:$0xff]
    %v78 = vld [vmem:[#allocation2 + $0xc8] sm:$0xff]
    %v79 = vld [vmem:[#allocation2 + $0xd0] sm:$0xff]
    %v80 = vld [vmem:[#allocation2 + $0xd8] sm:$0xff]
    %v81 = vld [vmem:[#allocation2 + $0xe0] sm:$0xff]
    %v82 = vld [vmem:[#allocation2 + $0xe8] sm:$0xff]
    %v83 = vld [vmem:[#allocation2 + $0xf0] sm:$0xff]
    %v84 = vld [vmem:[#allocation2 + $0xf8] sm:$0xff]
    %v85 = vld [vmem:[#allocation2 + $0x100] sm:$0xff]
    %v86 = vld [vmem:[#allocation2 + $0x108] sm:$0xff]
    %v87 = vld [vmem:[#allocation2 + $0x110] sm:$0xff]
    %v88 = vld [vmem:[#allocation2 + $0x118] sm:$0xff]
    %v89 = vld [vmem:[#allocation2 + $0x120] sm:$0xff]
    %v90 = vld [vmem:[#allocation2 + $0x128] sm:$0xff]
    %v91 = vld [vmem:[#allocation2 + $0x130] sm:$0xff]
    %v92 = vld [vmem:[#allocation2 + $0x138] sm:$0xff]
    %v93 = vld [vmem:[#allocation2 + $0x140] sm:$0xff]
    %v94 = vld [vmem:[#allocation2 + $0x148] sm:$0xff]
    %v95 = vld [vmem:[#allocation2 + $0x150] sm:$0xff]
    %v96 = vld [vmem:[#allocation2 + $0x158] sm:$0xff]
    %v97 = vld [vmem:[#allocation2 + $0x160] sm:$0xff]
    %v98 = vld [vmem:[#allocation2 + $0x168] sm:$0xff]
    %v99 = vld [vmem:[#allocation2 + $0x170] sm:$0xff]
    %v100 = vld [vmem:[#allocation2 + $0x178] sm:$0xff]
    %v101 = vld [vmem:[#allocation2 + $0x180] sm:$0xff]
    %v102 = vld [vmem:[#allocation2 + $0x188] sm:$0xff]
    %v103 = vld [vmem:[#allocation2 + $0x190] sm:$0xff]
    %v104 = vld [vmem:[#allocation2 + $0x198] sm:$0xff]
    %v105 = vld [vmem:[#allocation2 + $0x1a0] sm:$0xff]
    %v106 = vld [vmem:[#allocation2 + $0x1a8] sm:$0xff]
    %v107 = vld [vmem:[#allocation2 + $0x1b0] sm:$0xff]
    %v108 = vld [vmem:[#allocation2 + $0x1b8] sm:$0xff]
    %v109 = vld [vmem:[#allocation2 + $0x1c0] sm:$0xff]
    %v110 = vld [vmem:[#allocation2 + $0x1c8] sm:$0xff]
    %v111 = vld [vmem:[#allocation2 + $0x1d0] sm:$0xff]
    %v112 = vld [vmem:[#allocation2 + $0x1d8] sm:$0xff]
    %v113 = vld [vmem:[#allocation2 + $0x1e0] sm:$0xff]
    %v114 = vld [vmem:[#allocation2 + $0x1e8] sm:$0xff]
    %v115 = vld [vmem:[#allocation2 + $0x1f0] sm:$0xff]
    %v116 = vld [vmem:[#allocation2 + $0x1f8] sm:$0xff]
    %v117 = vpack.c.bf16 %v54, %v53
    %v118 = vpack.c.bf16 %v56, %v55
    %v119 = vpack.c.bf16 %v58, %v57
    %v120 = vpack.c.bf16 %v60, %v59
    %v121 = vpack.c.bf16 %v62, %v61
    %v122 = vpack.c.bf16 %v64, %v63
    %v123 = vpack.c.bf16 %v66, %v65
    %v124 = vpack.c.bf16 %v68, %v67
    %v125 = vpack.c.bf16 %v70, %v69
    %v126 = vpack.c.bf16 %v72, %v71
    %v127 = vpack.c.bf16 %v74, %v73
    %v128 = vpack.c.bf16 %v76, %v75
    %v129 = vpack.c.bf16 %v78, %v77
    %v130 = vpack.c.bf16 %v80, %v79
    %v131 = vpack.c.bf16 %v82, %v81
    %v132 = vpack.c.bf16 %v84, %v83
    %v133 = vpack.c.bf16 %v86, %v85
    %v134 = vpack.c.bf16 %v88, %v87
    %v135 = vpack.c.bf16 %v90, %v89
    %v136 = vpack.c.bf16 %v92, %v91
    %v137 = vpack.c.bf16 %v94, %v93
    %v138 = vpack.c.bf16 %v96, %v95
    %v139 = vpack.c.bf16 %v98, %v97
    %v140 = vpack.c.bf16 %v100, %v99
    %v141 = vpack.c.bf16 %v102, %v101
    %v142 = vpack.c.bf16 %v104, %v103
    %v143 = vpack.c.bf16 %v106, %v105
    %v144 = vpack.c.bf16 %v108, %v107
    %v145 = vpack.c.bf16 %v110, %v109
    %v146 = vpack.c.bf16 %v112, %v111
    %v147 = vpack.c.bf16 %v114, %v113
    %v148 = vpack.c.bf16 %v116, %v115
    %v149 = vld [vmem:[#allocation5] sm:$0x3]
    %v150 = vld [vmem:[#allocation7] sm:$0x1]
    %v152 = vlaneseq
    %v153 = vshrl.u32 %v152, 7
    %v154 = vsub.s32 0, %v153
    %v155 = vrot.slane %v150, %v154
    %vm157 = vcmask 31744
    %v159 = vsel %vm157, %v117, 0
    %v162 = vsel %vm157, %v118, 0
    %v165 = vsel %vm157, %v119, 0
    %v168 = vsel %vm157, %v120, 0
    %v171 = vsel %vm157, %v121, 0
    %v174 = vsel %vm157, %v122, 0
    %v177 = vsel %vm157, %v123, 0
    %v180 = vsel %vm157, %v124, 0
    %v183 = vsel %vm157, %v125, 0
    %v186 = vsel %vm157, %v126, 0
    %v189 = vsel %vm157, %v127, 0
    %v192 = vsel %vm157, %v128, 0
    %v195 = vsel %vm157, %v129, 0
    %v198 = vsel %vm157, %v130, 0
    %v201 = vsel %vm157, %v131, 0
    %v204 = vsel %vm157, %v132, 0
    %v207 = vsel %vm157, %v133, 0
    %v210 = vsel %vm157, %v134, 0
    %v213 = vsel %vm157, %v135, 0
    %v216 = vsel %vm157, %v136, 0
    %v219 = vsel %vm157, %v137, 0
    %v222 = vsel %vm157, %v138, 0
    %v225 = vsel %vm157, %v139, 0
    %v228 = vsel %vm157, %v140, 0
    %v231 = vsel %vm157, %v141, 0
    %v234 = vsel %vm157, %v142, 0
    %v237 = vsel %vm157, %v143, 0
    %v240 = vsel %vm157, %v144, 0
    %v243 = vsel %vm157, %v145, 0
    %v246 = vsel %vm157, %v146, 0
    %v249 = vsel %vm157, %v147, 0
    %v252 = vsel %vm157, %v148, 0
    %vm254 = vcmask 1041408
    %v256 = vsel %vm254, %v149, 0
    %258 = vmatprep.subr.bf16.mxu0 0
    %259 = vmatpush1.bf16.msra.mxu0 %v256
    %260 = vmatprep.subr.bf16.mxu0 0
    %261 = vmatpush1.bf16.msra.mxu0 0
    %262 = vmatprep.subr.bf16.mxu0 0
    %263 = vmatpush1.bf16.msra.mxu0 0
    %264 = vmatprep.subr.bf16.mxu0 0
    %265 = vmatpush1.bf16.msra.mxu0 0
    %266 = vmatprep.subr.bf16.mxu0 0
    %267 = vmatpush1.bf16.msra.mxu0 0
    %268 = vmatprep.subr.bf16.mxu0 0
    %269 = vmatpush1.bf16.msra.mxu0 0
    %270 = vmatprep.subr.bf16.mxu0 0
    %271 = vmatpush1.bf16.msra.mxu0 0
    %272 = vmatprep.subr.bf16.mxu0 0
    %273 = vmatpush1.bf16.msra.mxu0 0
    %274 = vmatprep.subr.bf16.mxu0 0
    %275 = vmatpush1.bf16.msra.mxu0 0
    %276 = vmatprep.subr.bf16.mxu0 0
    %277 = vmatpush1.bf16.msra.mxu0 0
    %278 = vmatprep.subr.bf16.mxu0 0
    %279 = vmatpush1.bf16.msra.mxu0 0
    %280 = vmatprep.subr.bf16.mxu0 0
    %281 = vmatpush1.bf16.msra.mxu0 0
    %282 = vmatprep.subr.bf16.mxu0 0
    %283 = vmatpush1.bf16.msra.mxu0 0
    %284 = vmatprep.subr.bf16.mxu0 0
    %285 = vmatpush1.bf16.msra.mxu0 0
    %286 = vmatprep.subr.bf16.mxu0 0
    %287 = vmatpush1.bf16.msra.mxu0 0
    %288 = vmatprep.subr.bf16.mxu0 0
    %289 = vmatpush1.bf16.msra.mxu0 0
    %290 = vmatprep.mubr.bf16.mxu0 0
    %291 = vmatmul.mubr.bf16.gmra.mrb[0].mxu0 %v159
    %v292 = vpop.f32.mrb[0].mxu0
    %v293 = vadd.f32 %v155, %v292
    %v294 = vpop.f32.mrb[0].mxu0
    %v295 = vpop.f32.mrb[0].mxu0
    %v296 = vadd.f32 %v155, %v295
    %v297 = vpop.f32.mrb[0].mxu0
    %298 = vmatprep.mubr.bf16.mxu0 0
    %299 = vmatmul.mubr.bf16.gmra.mrb[0].mxu0 %v162
    %v300 = vpop.f32.mrb[0].mxu0
    %v301 = vadd.f32 %v155, %v300
    %v302 = vpop.f32.mrb[0].mxu0
    %v303 = vpop.f32.mrb[0].mxu0
    %v304 = vadd.f32 %v155, %v303
    %v305 = vpop.f32.mrb[0].mxu0
    %306 = vmatprep.mubr.bf16.mxu0 0
    %307 = vmatmul.mubr.bf16.gmra.mrb[0].mxu0 %v165
    %v308 = vpop.f32.mrb[0].mxu0
    %v309 = vadd.f32 %v155, %v308
    %v310 = vpop.f32.mrb[0].mxu0
    %v311 = vpop.f32.mrb[0].mxu0
    %v312 = vadd.f32 %v155, %v311
    %v313 = vpop.f32.mrb[0].mxu0
    %314 = vmatprep.mubr.bf16.mxu0 0
    %315 = vmatmul.mubr.bf16.gmra.mrb[0].mxu0 %v168
    %v316 = vpop.f32.mrb[0].mxu0
    %v317 = vadd.f32 %v155, %v316
    %v318 = vpop.f32.mrb[0].mxu0
    %v319 = vpop.f32.mrb[0].mxu0
    %v320 = vadd.f32 %v155, %v319
    %v321 = vpop.f32.mrb[0].mxu0
    %322 = vmatprep.mubr.bf16.mxu0 0
    %323 = vmatmul.mubr.bf16.gmra.mrb[0].mxu0 %v171
    %v324 = vpop.f32.mrb[0].mxu0
    %v325 = vadd.f32 %v155, %v324
    %v326 = vpop.f32.mrb[0].mxu0
    %v327 = vpop.f32.mrb[0].mxu0
    %v328 = vadd.f32 %v155, %v327
    %v329 = vpop.f32.mrb[0].mxu0
    %330 = vmatprep.mubr.bf16.mxu0 0
    %331 = vmatmul.mubr.bf16.gmra.mrb[0].mxu0 %v174
    %v332 = vpop.f32.mrb[0].mxu0
    %v333 = vadd.f32 %v155, %v332
    %v334 = vpop.f32.mrb[0].mxu0
    %v335 = vpop.f32.mrb[0].mxu0
    %v336 = vadd.f32 %v155, %v335
    %v337 = vpop.f32.mrb[0].mxu0
    %338 = vmatprep.mubr.bf16.mxu0 0
    %339 = vmatmul.mubr.bf16.gmra.mrb[0].mxu0 %v177
    %v340 = vpop.f32.mrb[0].mxu0
    %v341 = vadd.f32 %v155, %v340
    %v342 = vpop.f32.mrb[0].mxu0
    %v343 = vpop.f32.mrb[0].mxu0
    %v344 = vadd.f32 %v155, %v343
    %v345 = vpop.f32.mrb[0].mxu0
    %346 = vmatprep.mubr.bf16.mxu0 0
    %347 = vmatmul.mubr.bf16.gmra.mrb[0].mxu0 %v180
    %v348 = vpop.f32.mrb[0].mxu0
    %v349 = vadd.f32 %v155, %v348
    %v350 = vpop.f32.mrb[0].mxu0
    %v351 = vpop.f32.mrb[0].mxu0
    %v352 = vadd.f32 %v155, %v351
    %v353 = vpop.f32.mrb[0].mxu0
    %354 = vmatprep.mubr.bf16.mxu0 0
    %355 = vmatmul.mubr.bf16.gmra.mrb[0].mxu0 %v183
    %v356 = vpop.f32.mrb[0].mxu0
    %v357 = vadd.f32 %v155, %v356
    %v358 = vpop.f32.mrb[0].mxu0
    %v359 = vpop.f32.mrb[0].mxu0
    %v360 = vadd.f32 %v155, %v359
    %v361 = vpop.f32.mrb[0].mxu0
    %362 = vmatprep.mubr.bf16.mxu0 0
    %363 = vmatmul.mubr.bf16.gmra.mrb[0].mxu0 %v186
    %v364 = vpop.f32.mrb[0].mxu0
    %v365 = vadd.f32 %v155, %v364
    %v366 = vpop.f32.mrb[0].mxu0
    %v367 = vpop.f32.mrb[0].mxu0
    %v368 = vadd.f32 %v155, %v367
    %v369 = vpop.f32.mrb[0].mxu0
    %370 = vmatprep.mubr.bf16.mxu0 0
    %371 = vmatmul.mubr.bf16.gmra.mrb[0].mxu0 %v189
    %v372 = vpop.f32.mrb[0].mxu0
    %v373 = vadd.f32 %v155, %v372
    %v374 = vpop.f32.mrb[0].mxu0
    %v375 = vpop.f32.mrb[0].mxu0
    %v376 = vadd.f32 %v155, %v375
    %v377 = vpop.f32.mrb[0].mxu0
    %378 = vmatprep.mubr.bf16.mxu0 0
    %379 = vmatmul.mubr.bf16.gmra.mrb[0].mxu0 %v192
    %v380 = vpop.f32.mrb[0].mxu0
    %v381 = vadd.f32 %v155, %v380
    %v382 = vpop.f32.mrb[0].mxu0
    %v383 = vpop.f32.mrb[0].mxu0
    %v384 = vadd.f32 %v155, %v383
    %v385 = vpop.f32.mrb[0].mxu0
    %386 = vmatprep.mubr.bf16.mxu0 0
    %387 = vmatmul.mubr.bf16.gmra.mrb[0].mxu0 %v195
    %v388 = vpop.f32.mrb[0].mxu0
    %v389 = vadd.f32 %v155, %v388
    %v390 = vpop.f32.mrb[0].mxu0
    %v391 = vpop.f32.mrb[0].mxu0
    %v392 = vadd.f32 %v155, %v391
    %v393 = vpop.f32.mrb[0].mxu0
    %394 = vmatprep.mubr.bf16.mxu0 0
    %395 = vmatmul.mubr.bf16.gmra.mrb[0].mxu0 %v198
    %v396 = vpop.f32.mrb[0].mxu0
    %v397 = vadd.f32 %v155, %v396
    %v398 = vpop.f32.mrb[0].mxu0
    %v399 = vpop.f32.mrb[0].mxu0
    %v400 = vadd.f32 %v155, %v399
    %v401 = vpop.f32.mrb[0].mxu0
    %402 = vmatprep.mubr.bf16.mxu0 0
    %403 = vmatmul.mubr.bf16.gmra.mrb[0].mxu0 %v201
    %v404 = vpop.f32.mrb[0].mxu0
    %v405 = vadd.f32 %v155, %v404
    %v406 = vpop.f32.mrb[0].mxu0
    %v407 = vpop.f32.mrb[0].mxu0
    %v408 = vadd.f32 %v155, %v407
    %v409 = vpop.f32.mrb[0].mxu0
    %410 = vmatprep.mubr.bf16.mxu0 0
    %411 = vmatmul.mubr.bf16.gmra.mrb[0].mxu0 %v204
    %v412 = vpop.f32.mrb[0].mxu0
    %v413 = vadd.f32 %v155, %v412
    %v414 = vpop.f32.mrb[0].mxu0
    %v415 = vpop.f32.mrb[0].mxu0
    %v416 = vadd.f32 %v155, %v415
    %v417 = vpop.f32.mrb[0].mxu0
    %418 = vmatprep.mubr.bf16.mxu0 0
    %419 = vmatmul.mubr.bf16.gmra.mrb[0].mxu0 %v207
    %v420 = vpop.f32.mrb[0].mxu0
    %v421 = vadd.f32 %v155, %v420
    %v422 = vpop.f32.mrb[0].mxu0
    %v423 = vpop.f32.mrb[0].mxu0
    %v424 = vadd.f32 %v155, %v423
    %v425 = vpop.f32.mrb[0].mxu0
    %426 = vmatprep.mubr.bf16.mxu0 0
    %427 = vmatmul.mubr.bf16.gmra.mrb[0].mxu0 %v210
    %v428 = vpop.f32.mrb[0].mxu0
    %v429 = vadd.f32 %v155, %v428
    %v430 = vpop.f32.mrb[0].mxu0
    %v431 = vpop.f32.mrb[0].mxu0
    %v432 = vadd.f32 %v155, %v431
    %v433 = vpop.f32.mrb[0].mxu0
    %434 = vmatprep.mubr.bf16.mxu0 0
    %435 = vmatmul.mubr.bf16.gmra.mrb[0].mxu0 %v213
    %v436 = vpop.f32.mrb[0].mxu0
    %v437 = vadd.f32 %v155, %v436
    %v438 = vpop.f32.mrb[0].mxu0
    %v439 = vpop.f32.mrb[0].mxu0
    %v440 = vadd.f32 %v155, %v439
    %v441 = vpop.f32.mrb[0].mxu0
    %442 = vmatprep.mubr.bf16.mxu0 0
    %443 = vmatmul.mubr.bf16.gmra.mrb[0].mxu0 %v216
    %v444 = vpop.f32.mrb[0].mxu0
    %v445 = vadd.f32 %v155, %v444
    %v446 = vpop.f32.mrb[0].mxu0
    %v447 = vpop.f32.mrb[0].mxu0
    %v448 = vadd.f32 %v155, %v447
    %v449 = vpop.f32.mrb[0].mxu0
    %450 = vmatprep.mubr.bf16.mxu0 0
    %451 = vmatmul.mubr.bf16.gmra.mrb[0].mxu0 %v219
    %v452 = vpop.f32.mrb[0].mxu0
    %v453 = vadd.f32 %v155, %v452
    %v454 = vpop.f32.mrb[0].mxu0
    %v455 = vpop.f32.mrb[0].mxu0
    %v456 = vadd.f32 %v155, %v455
    %v457 = vpop.f32.mrb[0].mxu0
    %458 = vmatprep.mubr.bf16.mxu0 0
    %459 = vmatmul.mubr.bf16.gmra.mrb[0].mxu0 %v222
    %v460 = vpop.f32.mrb[0].mxu0
    %v461 = vadd.f32 %v155, %v460
    %v462 = vpop.f32.mrb[0].mxu0
    %v463 = vpop.f32.mrb[0].mxu0
    %v464 = vadd.f32 %v155, %v463
    %v465 = vpop.f32.mrb[0].mxu0
    %466 = vmatprep.mubr.bf16.mxu0 0
    %467 = vmatmul.mubr.bf16.gmra.mrb[0].mxu0 %v225
    %v468 = vpop.f32.mrb[0].mxu0
    %v469 = vadd.f32 %v155, %v468
    %v470 = vpop.f32.mrb[0].mxu0
    %v471 = vpop.f32.mrb[0].mxu0
    %v472 = vadd.f32 %v155, %v471
    %v473 = vpop.f32.mrb[0].mxu0
    %474 = vmatprep.mubr.bf16.mxu0 0
    %475 = vmatmul.mubr.bf16.gmra.mrb[0].mxu0 %v228
    %v476 = vpop.f32.mrb[0].mxu0
    %v477 = vadd.f32 %v155, %v476
    %v478 = vpop.f32.mrb[0].mxu0
    %v479 = vpop.f32.mrb[0].mxu0
    %v480 = vadd.f32 %v155, %v479
    %v481 = vpop.f32.mrb[0].mxu0
    %482 = vmatprep.mubr.bf16.mxu0 0
    %483 = vmatmul.mubr.bf16.gmra.mrb[0].mxu0 %v231
    %v484 = vpop.f32.mrb[0].mxu0
    %v485 = vadd.f32 %v155, %v484
    %v486 = vpop.f32.mrb[0].mxu0
    %v487 = vpop.f32.mrb[0].mxu0
    %v488 = vadd.f32 %v155, %v487
    %v489 = vpop.f32.mrb[0].mxu0
    %490 = vmatprep.mubr.bf16.mxu0 0
    %491 = vmatmul.mubr.bf16.gmra.mrb[0].mxu0 %v234
    %v492 = vpop.f32.mrb[0].mxu0
    %v493 = vadd.f32 %v155, %v492
    %v494 = vpop.f32.mrb[0].mxu0
    %v495 = vpop.f32.mrb[0].mxu0
    %v496 = vadd.f32 %v155, %v495
    %v497 = vpop.f32.mrb[0].mxu0
    %498 = vmatprep.mubr.bf16.mxu0 0
    %499 = vmatmul.mubr.bf16.gmra.mrb[0].mxu0 %v237
    %v500 = vpop.f32.mrb[0].mxu0
    %v501 = vadd.f32 %v155, %v500
    %v502 = vpop.f32.mrb[0].mxu0
    %v503 = vpop.f32.mrb[0].mxu0
    %v504 = vadd.f32 %v155, %v503
    %v505 = vpop.f32.mrb[0].mxu0
    %506 = vmatprep.mubr.bf16.mxu0 0
    %507 = vmatmul.mubr.bf16.gmra.mrb[0].mxu0 %v240
    %v508 = vpop.f32.mrb[0].mxu0
    %v509 = vadd.f32 %v155, %v508
    %v510 = vpop.f32.mrb[0].mxu0
    %v511 = vpop.f32.mrb[0].mxu0
    %v512 = vadd.f32 %v155, %v511
    %v513 = vpop.f32.mrb[0].mxu0
    %514 = vmatprep.mubr.bf16.mxu0 0
    %515 = vmatmul.mubr.bf16.gmra.mrb[0].mxu0 %v243
    %v516 = vpop.f32.mrb[0].mxu0
    %v517 = vadd.f32 %v155, %v516
    %v518 = vpop.f32.mrb[0].mxu0
    %v519 = vpop.f32.mrb[0].mxu0
    %v520 = vadd.f32 %v155, %v519
    %v521 = vpop.f32.mrb[0].mxu0
    %522 = vmatprep.mubr.bf16.mxu0 0
    %523 = vmatmul.mubr.bf16.gmra.mrb[0].mxu0 %v246
    %v524 = vpop.f32.mrb[0].mxu0
    %v525 = vadd.f32 %v155, %v524
    %v526 = vpop.f32.mrb[0].mxu0
    %v527 = vpop.f32.mrb[0].mxu0
    %v528 = vadd.f32 %v155, %v527
    %v529 = vpop.f32.mrb[0].mxu0
    %530 = vmatprep.mubr.bf16.mxu0 0
    %531 = vmatmul.mubr.bf16.gmra.mrb[0].mxu0 %v249
    %v532 = vpop.f32.mrb[0].mxu0
    %v533 = vadd.f32 %v155, %v532
    %v534 = vpop.f32.mrb[0].mxu0
    %v535 = vpop.f32.mrb[0].mxu0
    %v536 = vadd.f32 %v155, %v535
    %v537 = vpop.f32.mrb[0].mxu0
    %538 = vmatprep.mubr.bf16.mxu0 0
    %539 = vmatmul.mubr.bf16.gmra.mrb[0].mxu0 %v252
    %v540 = vpop.f32.mrb[0].mxu0
    %v541 = vadd.f32 %v155, %v540
    %v542 = vpop.f32.mrb[0].mxu0
    %v543 = vpop.f32.mrb[0].mxu0
    %v544 = vadd.f32 %v155, %v543
    %v545 = vpop.f32.mrb[0].mxu0
    %546 = vdwg.mxu0
    %v547 = vmax.f32 %v293, 0.0
    %v548 = vmax.f32 %v296, 0.0
    %v549 = vmax.f32 %v301, 0.0
    %v550 = vmax.f32 %v304, 0.0
    %v551 = vmax.f32 %v309, 0.0
    %v552 = vmax.f32 %v312, 0.0
    %v553 = vmax.f32 %v317, 0.0
    %v554 = vmax.f32 %v320, 0.0
    %v555 = vmax.f32 %v325, 0.0
    %v556 = vmax.f32 %v328, 0.0
    %v557 = vmax.f32 %v333, 0.0
    %v558 = vmax.f32 %v336, 0.0
    %v559 = vmax.f32 %v341, 0.0
    %v560 = vmax.f32 %v344, 0.0
    %v561 = vmax.f32 %v349, 0.0
    %v562 = vmax.f32 %v352, 0.0
    %v563 = vmax.f32 %v357, 0.0
    %v564 = vmax.f32 %v360, 0.0
    %v565 = vmax.f32 %v365, 0.0
    %v566 = vmax.f32 %v368, 0.0
    %v567 = vmax.f32 %v373, 0.0
    %v568 = vmax.f32 %v376, 0.0
    %v569 = vmax.f32 %v381, 0.0
    %v570 = vmax.f32 %v384, 0.0
    %v571 = vmax.f32 %v389, 0.0
    %v572 = vmax.f32 %v392, 0.0
    %v573 = vmax.f32 %v397, 0.0
    %v574 = vmax.f32 %v400, 0.0
    %v575 = vmax.f32 %v405, 0.0
    %v576 = vmax.f32 %v408, 0.0
    %v577 = vmax.f32 %v413, 0.0
    %v578 = vmax.f32 %v416, 0.0
    %v579 = vmax.f32 %v421, 0.0
    %v580 = vmax.f32 %v424, 0.0
    %v581 = vmax.f32 %v429, 0.0
    %v582 = vmax.f32 %v432, 0.0
    %v583 = vmax.f32 %v437, 0.0
    %v584 = vmax.f32 %v440, 0.0
    %v585 = vmax.f32 %v445, 0.0
    %v586 = vmax.f32 %v448, 0.0
    %v587 = vmax.f32 %v453, 0.0
    %v588 = vmax.f32 %v456, 0.0
    %v589 = vmax.f32 %v461, 0.0
    %v590 = vmax.f32 %v464, 0.0
    %v591 = vmax.f32 %v469, 0.0
    %v592 = vmax.f32 %v472, 0.0
    %v593 = vmax.f32 %v477, 0.0
    %v594 = vmax.f32 %v480, 0.0
    %v595 = vmax.f32 %v485, 0.0
    %v596 = vmax.f32 %v488, 0.0
    %v597 = vmax.f32 %v493, 0.0
    %v598 = vmax.f32 %v496, 0.0
    %v599 = vmax.f32 %v501, 0.0
    %v600 = vmax.f32 %v504, 0.0
    %v601 = vmax.f32 %v509, 0.0
    %v602 = vmax.f32 %v512, 0.0
    %v603 = vmax.f32 %v517, 0.0
    %v604 = vmax.f32 %v520, 0.0
    %v605 = vmax.f32 %v525, 0.0
    %v606 = vmax.f32 %v528, 0.0
    %v607 = vmax.f32 %v533, 0.0
    %v608 = vmax.f32 %v536, 0.0
    %v609 = vmax.f32 %v541, 0.0
    %v610 = vmax.f32 %v544, 0.0
    %v611 = vpack.c.bf16 %v548, %v547
    %v612 = vpack.c.bf16 %v550, %v549
    %v613 = vpack.c.bf16 %v552, %v551
    %v614 = vpack.c.bf16 %v554, %v553
    %v615 = vpack.c.bf16 %v556, %v555
    %v616 = vpack.c.bf16 %v558, %v557
    %v617 = vpack.c.bf16 %v560, %v559
    %v618 = vpack.c.bf16 %v562, %v561
    %v619 = vpack.c.bf16 %v564, %v563
    %v620 = vpack.c.bf16 %v566, %v565
    %v621 = vpack.c.bf16 %v568, %v567
    %v622 = vpack.c.bf16 %v570, %v569
    %v623 = vpack.c.bf16 %v572, %v571
    %v624 = vpack.c.bf16 %v574, %v573
    %v625 = vpack.c.bf16 %v576, %v575
    %v626 = vpack.c.bf16 %v578, %v577
    %v627 = vpack.c.bf16 %v580, %v579
    %v628 = vpack.c.bf16 %v582, %v581
    %v629 = vpack.c.bf16 %v584, %v583
    %v630 = vpack.c.bf16 %v586, %v585
    %v631 = vpack.c.bf16 %v588, %v587
    %v632 = vpack.c.bf16 %v590, %v589
    %v633 = vpack.c.bf16 %v592, %v591
    %v634 = vpack.c.bf16 %v594, %v593
    %v635 = vpack.c.bf16 %v596, %v595
    %v636 = vpack.c.bf16 %v598, %v597
    %v637 = vpack.c.bf16 %v600, %v599
    %v638 = vpack.c.bf16 %v602, %v601
    %v639 = vpack.c.bf16 %v604, %v603
    %v640 = vpack.c.bf16 %v606, %v605
    %v641 = vpack.c.bf16 %v608, %v607
    %v642 = vpack.c.bf16 %v610, %v609
    %v675 = vunpack.c.l.b16 %v611
    %v676 = vunpack.c.h.b16 %v611
    %v677 = vunpack.c.l.b16 %v612
    %v678 = vunpack.c.h.b16 %v612
    %v679 = vunpack.c.l.b16 %v613
    %v680 = vunpack.c.h.b16 %v613
    %v681 = vunpack.c.l.b16 %v614
    %v682 = vunpack.c.h.b16 %v614
    %v683 = vunpack.c.l.b16 %v615
    %v684 = vunpack.c.h.b16 %v615
    %v685 = vunpack.c.l.b16 %v616
    %v686 = vunpack.c.h.b16 %v616
    %v687 = vunpack.c.l.b16 %v617
    %v688 = vunpack.c.h.b16 %v617
    %v689 = vunpack.c.l.b16 %v618
    %v690 = vunpack.c.h.b16 %v618
    %v691 = vunpack.c.l.b16 %v619
    %v692 = vunpack.c.h.b16 %v619
    %v693 = vunpack.c.l.b16 %v620
    %v694 = vunpack.c.h.b16 %v620
    %v695 = vunpack.c.l.b16 %v621
    %v696 = vunpack.c.h.b16 %v621
    %v697 = vunpack.c.l.b16 %v622
    %v698 = vunpack.c.h.b16 %v622
    %v699 = vunpack.c.l.b16 %v623
    %v700 = vunpack.c.h.b16 %v623
    %v701 = vunpack.c.l.b16 %v624
    %v702 = vunpack.c.h.b16 %v624
    %v703 = vunpack.c.l.b16 %v625
    %v704 = vunpack.c.h.b16 %v625
    %v705 = vunpack.c.l.b16 %v626
    %v706 = vunpack.c.h.b16 %v626
    %v707 = vunpack.c.l.b16 %v627
    %v708 = vunpack.c.h.b16 %v627
    %v709 = vunpack.c.l.b16 %v628
    %v710 = vunpack.c.h.b16 %v628
    %v711 = vunpack.c.l.b16 %v629
    %v712 = vunpack.c.h.b16 %v629
    %v713 = vunpack.c.l.b16 %v630
    %v714 = vunpack.c.h.b16 %v630
    %v715 = vunpack.c.l.b16 %v631
    %v716 = vunpack.c.h.b16 %v631
    %v717 = vunpack.c.l.b16 %v632
    %v718 = vunpack.c.h.b16 %v632
    %v719 = vunpack.c.l.b16 %v633
    %v720 = vunpack.c.h.b16 %v633
    %v721 = vunpack.c.l.b16 %v634
    %v722 = vunpack.c.h.b16 %v634
    %v723 = vunpack.c.l.b16 %v635
    %v724 = vunpack.c.h.b16 %v635
    %v725 = vunpack.c.l.b16 %v636
    %v726 = vunpack.c.h.b16 %v636
    %v727 = vunpack.c.l.b16 %v637
    %v728 = vunpack.c.h.b16 %v637
    %v729 = vunpack.c.l.b16 %v638
    %v730 = vunpack.c.h.b16 %v638
    %v731 = vunpack.c.l.b16 %v639
    %v732 = vunpack.c.h.b16 %v639
    %v733 = vunpack.c.l.b16 %v640
    %v734 = vunpack.c.h.b16 %v640
    %v735 = vunpack.c.l.b16 %v641
    %v736 = vunpack.c.h.b16 %v641
    %v737 = vunpack.c.l.b16 %v642
    %v738 = vunpack.c.h.b16 %v642
    %v739 = vpack.c.b16 %v675, %v675
    %v740 = vpack.c.b16 %v676, %v676
    %v741 = vpack.c.b16 %v677, %v677
    %v742 = vpack.c.b16 %v678, %v678
    %v743 = vpack.c.b16 %v679, %v679
    %v744 = vpack.c.b16 %v680, %v680
    %v745 = vpack.c.b16 %v681, %v681
    %v746 = vpack.c.b16 %v682, %v682
    %v747 = vpack.c.b16 %v683, %v683
    %v748 = vpack.c.b16 %v684, %v684
    %v749 = vpack.c.b16 %v685, %v685
    %v750 = vpack.c.b16 %v686, %v686
    %v751 = vpack.c.b16 %v687, %v687
    %v752 = vpack.c.b16 %v688, %v688
    %v753 = vpack.c.b16 %v689, %v689
    %v754 = vpack.c.b16 %v690, %v690
    %v755 = vpack.c.b16 %v691, %v691
    %v756 = vpack.c.b16 %v692, %v692
    %v757 = vpack.c.b16 %v693, %v693
    %v758 = vpack.c.b16 %v694, %v694
    %v759 = vpack.c.b16 %v695, %v695
    %v760 = vpack.c.b16 %v696, %v696
    %v761 = vpack.c.b16 %v697, %v697
    %v762 = vpack.c.b16 %v698, %v698
    %v763 = vpack.c.b16 %v699, %v699
    %v764 = vpack.c.b16 %v700, %v700
    %v765 = vpack.c.b16 %v701, %v701
    %v766 = vpack.c.b16 %v702, %v702
    %v767 = vpack.c.b16 %v703, %v703
    %v768 = vpack.c.b16 %v704, %v704
    %v769 = vpack.c.b16 %v705, %v705
    %v770 = vpack.c.b16 %v706, %v706
    %v771 = vpack.c.b16 %v707, %v707
    %v772 = vpack.c.b16 %v708, %v708
    %v773 = vpack.c.b16 %v709, %v709
    %v774 = vpack.c.b16 %v710, %v710
    %v775 = vpack.c.b16 %v711, %v711
    %v776 = vpack.c.b16 %v712, %v712
    %v777 = vpack.c.b16 %v713, %v713
    %v778 = vpack.c.b16 %v714, %v714
    %v779 = vpack.c.b16 %v715, %v715
    %v780 = vpack.c.b16 %v716, %v716
    %v781 = vpack.c.b16 %v717, %v717
    %v782 = vpack.c.b16 %v718, %v718
    %v783 = vpack.c.b16 %v719, %v719
    %v784 = vpack.c.b16 %v720, %v720
    %v785 = vpack.c.b16 %v721, %v721
    %v786 = vpack.c.b16 %v722, %v722
    %v787 = vpack.c.b16 %v723, %v723
    %v788 = vpack.c.b16 %v724, %v724
    %v789 = vpack.c.b16 %v725, %v725
    %v790 = vpack.c.b16 %v726, %v726
    %v791 = vpack.c.b16 %v727, %v727
    %v792 = vpack.c.b16 %v728, %v728
    %v793 = vpack.c.b16 %v729, %v729
    %v794 = vpack.c.b16 %v730, %v730
    %v795 = vpack.c.b16 %v731, %v731
    %v796 = vpack.c.b16 %v732, %v732
    %v797 = vpack.c.b16 %v733, %v733
    %v798 = vpack.c.b16 %v734, %v734
    %v799 = vpack.c.b16 %v735, %v735
    %v800 = vpack.c.b16 %v736, %v736
    %v801 = vpack.c.b16 %v737, %v737
    %v802 = vpack.c.b16 %v738, %v738
    %vm867 = vcmask 60416
    %868 = vst.msk [vmem:[#allocation8] sm:$0xf] %vm867, %v739
    %869 = vst.msk [vmem:[#allocation8 + $0x4] sm:$0xf] %vm867, %v740
    %870 = vst.msk [vmem:[#allocation8 + $0x8] sm:$0xf] %vm867, %v741
    %871 = vst.msk [vmem:[#allocation8 + $0xc] sm:$0xf] %vm867, %v742
    %872 = vst.msk [vmem:[#allocation8 + $0x10] sm:$0xf] %vm867, %v743
    %873 = vst.msk [vmem:[#allocation8 + $0x14] sm:$0xf] %vm867, %v744
    %874 = vst.msk [vmem:[#allocation8 + $0x18] sm:$0xf] %vm867, %v745
    %875 = vst.msk [vmem:[#allocation8 + $0x1c] sm:$0xf] %vm867, %v746
    %876 = vst.msk [vmem:[#allocation8 + $0x20] sm:$0xf] %vm867, %v747
    %877 = vst.msk [vmem:[#allocation8 + $0x24] sm:$0xf] %vm867, %v748
    %878 = vst.msk [vmem:[#allocation8 + $0x28] sm:$0xf] %vm867, %v749
    %879 = vst.msk [vmem:[#allocation8 + $0x2c] sm:$0xf] %vm867, %v750
    %880 = vst.msk [vmem:[#allocation8 + $0x30] sm:$0xf] %vm867, %v751
    %881 = vst.msk [vmem:[#allocation8 + $0x34] sm:$0xf] %vm867, %v752
    %882 = vst.msk [vmem:[#allocation8 + $0x38] sm:$0xf] %vm867, %v753
    %883 = vst.msk [vmem:[#allocation8 + $0x3c] sm:$0xf] %vm867, %v754
    %884 = vst.msk [vmem:[#allocation8 + $0x40] sm:$0xf] %vm867, %v755
    %885 = vst.msk [vmem:[#allocation8 + $0x44] sm:$0xf] %vm867, %v756
    %886 = vst.msk [vmem:[#allocation8 + $0x48] sm:$0xf] %vm867, %v757
    %887 = vst.msk [vmem:[#allocation8 + $0x4c] sm:$0xf] %vm867, %v758
    %888 = vst.msk [vmem:[#allocation8 + $0x50] sm:$0xf] %vm867, %v759
    %889 = vst.msk [vmem:[#allocation8 + $0x54] sm:$0xf] %vm867, %v760
    %890 = vst.msk [vmem:[#allocation8 + $0x58] sm:$0xf] %vm867, %v761
    %891 = vst.msk [vmem:[#allocation8 + $0x5c] sm:$0xf] %vm867, %v762
    %892 = vst.msk [vmem:[#allocation8 + $0x60] sm:$0xf] %vm867, %v763
    %893 = vst.msk [vmem:[#allocation8 + $0x64] sm:$0xf] %vm867, %v764
    %894 = vst.msk [vmem:[#allocation8 + $0x68] sm:$0xf] %vm867, %v765
    %895 = vst.msk [vmem:[#allocation8 + $0x6c] sm:$0xf] %vm867, %v766
    %896 = vst.msk [vmem:[#allocation8 + $0x70] sm:$0xf] %vm867, %v767
    %897 = vst.msk [vmem:[#allocation8 + $0x74] sm:$0xf] %vm867, %v768
    %898 = vst.msk [vmem:[#allocation8 + $0x78] sm:$0xf] %vm867, %v769
    %899 = vst.msk [vmem:[#allocation8 + $0x7c] sm:$0xf] %vm867, %v770
    %900 = vst.msk [vmem:[#allocation8 + $0x80] sm:$0xf] %vm867, %v771
    %901 = vst.msk [vmem:[#allocation8 + $0x84] sm:$0xf] %vm867, %v772
    %902 = vst.msk [vmem:[#allocation8 + $0x88] sm:$0xf] %vm867, %v773
    %903 = vst.msk [vmem:[#allocation8 + $0x8c] sm:$0xf] %vm867, %v774
    %904 = vst.msk [vmem:[#allocation8 + $0x90] sm:$0xf] %vm867, %v775
    %905 = vst.msk [vmem:[#allocation8 + $0x94] sm:$0xf] %vm867, %v776
    %906 = vst.msk [vmem:[#allocation8 + $0x98] sm:$0xf] %vm867, %v777
    %907 = vst.msk [vmem:[#allocation8 + $0x9c] sm:$0xf] %vm867, %v778
    %908 = vst.msk [vmem:[#allocation8 + $0xa0] sm:$0xf] %vm867, %v779
    %909 = vst.msk [vmem:[#allocation8 + $0xa4] sm:$0xf] %vm867, %v780
    %910 = vst.msk [vmem:[#allocation8 + $0xa8] sm:$0xf] %vm867, %v781
    %911 = vst.msk [vmem:[#allocation8 + $0xac] sm:$0xf] %vm867, %v782
    %912 = vst.msk [vmem:[#allocation8 + $0xb0] sm:$0xf] %vm867, %v783
    %913 = vst.msk [vmem:[#allocation8 + $0xb4] sm:$0xf] %vm867, %v784
    %914 = vst.msk [vmem:[#allocation8 + $0xb8] sm:$0xf] %vm867, %v785
    %915 = vst.msk [vmem:[#allocation8 + $0xbc] sm:$0xf] %vm867, %v786
    %916 = vst.msk [vmem:[#allocation8 + $0xc0] sm:$0xf] %vm867, %v787
    %917 = vst.msk [vmem:[#allocation8 + $0xc4] sm:$0xf] %vm867, %v788
    %918 = vst.msk [vmem:[#allocation8 + $0xc8] sm:$0xf] %vm867, %v789
    %919 = vst.msk [vmem:[#allocation8 + $0xcc] sm:$0xf] %vm867, %v790
    %920 = vst.msk [vmem:[#allocation8 + $0xd0] sm:$0xf] %vm867, %v791
    %921 = vst.msk [vmem:[#allocation8 + $0xd4] sm:$0xf] %vm867, %v792
    %922 = vst.msk [vmem:[#allocation8 + $0xd8] sm:$0xf] %vm867, %v793
    %923 = vst.msk [vmem:[#allocation8 + $0xdc] sm:$0xf] %vm867, %v794
    %924 = vst.msk [vmem:[#allocation8 + $0xe0] sm:$0xf] %vm867, %v795
    %925 = vst.msk [vmem:[#allocation8 + $0xe4] sm:$0xf] %vm867, %v796
    %926 = vst.msk [vmem:[#allocation8 + $0xe8] sm:$0xf] %vm867, %v797
    %927 = vst.msk [vmem:[#allocation8 + $0xec] sm:$0xf] %vm867, %v798
    %928 = vst.msk [vmem:[#allocation8 + $0xf0] sm:$0xf] %vm867, %v799
    %929 = vst.msk [vmem:[#allocation8 + $0xf4] sm:$0xf] %vm867, %v800
    %930 = vst.msk [vmem:[#allocation8 + $0xf8] sm:$0xf] %vm867, %v801
    %931 = vst.msk [vmem:[#allocation8 + $0xfc] sm:$0xf] %vm867, %v802
    // Predicated region
    $region26: #{tpu_custom_call.1} parent=1 // pred_check
      _
    $region27: #{tpu_custom_call.1} parent=1 // pred_check_branch
      %933 = sbr.rel (0) target = $region29
    $region28: #{tpu_custom_call.1} parent=1 // pred_region
      %s935 = ssub.s32 4096, 4096
      %936 = vsyncadd [#allocation4], %s935
      %s937 = sshll.u32 [#allocation8], 4
      %s938 = int_to_ptr.vmem [resolvable:$true] %s937
      %943 = dma.vmem_to_hbm [thread:$0]  %s938, 4096, %s3, [#allocation4], 64, 64, 4
    $region29: #{tpu_custom_call.1} parent=1 // pred_fallthru
      _
    // Predicated region
    $region30: #{tpu_custom_call.1} parent=1 // pred_check
      _
    $region31: #{tpu_custom_call.1} parent=1 // pred_check_branch
      %945 = sbr.rel (0) target = $region33
    $region32: #{tpu_custom_call.1} parent=1 // pred_region
      %946 = dma.done [#allocation4], 4096
    $region33: #{tpu_custom_call.1} parent=1 // pred_fallthru
      _
    %947 = vsyncpa [#allocation3], 1
    %948 = vsyncpa [#allocation6], 1
    %949 = vsyncpa [#allocation4], 1

</llo_original>
